<compile_context>
chip_gen: v5e
topology: v5e:2x2
jax: 0.10.0
libtpu: 0.0.40
codegen_flags: <defaults>
</compile_context>

<pallas_src>
import functools

import numpy as np

import jax
import jax.numpy as jnp
from jax import lax
from jax.experimental import pallas as pl
from jax.experimental.pallas import tpu as pltpu


# ---------------------------------------------------------------------------
# Kernel
# ---------------------------------------------------------------------------
def _warp_kernel(intr_ref, tmat_ref, depth_ref, *rest,
                 img_width, img_height, tile_rows, has_motion, rigid, approx):
    if has_motion:
        motion_ref, u_ref, v_ref = rest
    else:
        motion_ref = None
        u_ref, v_ref = rest

    b = pl.program_id(0)
    row_base = pl.program_id(1) * tile_rows          # row offset of this tile

    # Per-batch pinhole intrinsics + 4x4 transform, all scalar (SMEM / sALU).
    fx = intr_ref[b, 0]
    fy = intr_ref[b, 1]
    cx = intr_ref[b, 2]
    cy = intr_ref[b, 3]
    inv_fx = 1.0 / fx
    inv_fy = 1.0 / fy
    t = [tmat_ref[b, k] for k in range(16)]

    d = depth_ref[0].astype(jnp.float32)             # (TH, W), upcast on VPU
    shp = d.shape
    # TODO(synk): a float32 broadcasted_iota would drop these two int->f32
    # converts (~2 of ~40 VPU ops/px); kept integer+convert for lowering safety.
    u2d = lax.broadcasted_iota(jnp.int32, shp, 1).astype(jnp.float32)
    v2d = (lax.broadcasted_iota(jnp.int32, shp, 0) + row_base).astype(jnp.float32)

    # Fold intrinsics into the transform rows (scalar ALU, free):
    #   row_i = d * (a_i*u + b_i*v + c_i) + t[i,3]
    # which equals t[i,0]*x3d + t[i,1]*y3d + t[i,2]*z3d + t[i,3] with
    #   x3d = d*(u-cx)/fx, y3d = d*(v-cy)/fy, z3d = d.
    def row(i):
        a = t[4 * i + 0] * inv_fx
        bb = t[4 * i + 1] * inv_fy
        c = t[4 * i + 2] - a * cx - bb * cy
        return d * (a * u2d + bb * v2d + c) + t[4 * i + 3]

    X = row(0)
    Y = row(1)
    Z = row(2)

    if has_motion:
        # object_motion_map added to the xyz (not homogeneous-w) channels.
        X = X + motion_ref[0, 0].astype(jnp.float32)
        Y = Y + motion_ref[0, 1].astype(jnp.float32)
        Z = Z + motion_ref[0, 2].astype(jnp.float32)

    if rigid:
        # Last transform row is exactly [0,0,0,1] => Wc == 1: skip the
        # homogeneous row and one reciprocal (v7x VALU trim).
        s = pl.reciprocal(jnp.maximum(Z, 1e-5), approx=approx)
    else:
        # De-homogenize + clamp z + project with EUP reciprocals:
        #   u = fx * (X/Wc) / max(Z/Wc, 1e-5) + cx, etc.
        Wc = row(3)
        inv_w = pl.reciprocal(Wc, approx=approx)
        zc = jnp.maximum(Z * inv_w, 1e-5)
        s = inv_w * pl.reciprocal(zc, approx=approx)  # == 1/(Wc * clamp(Z/Wc))

    # Fold the [-1, 1] normalization constants into the projection scalars:
    #   (proj/(dim-1) - 0.5)*2 == proj * (2/(dim-1)) - 1
    su = 2.0 / (img_width - 1)
    sv = 2.0 / (img_height - 1)
    gu = fx * su
    gv = fy * sv
    hu = cx * su - 1.0
    hv = cy * sv - 1.0

    u_ref[0] = (gu * (X * s) + hu).astype(u_ref.dtype)
    v_ref[0] = (gv * (Y * s) + hv).astype(v_ref.dtype)


# ---------------------------------------------------------------------------
# Tiling helpers
# ---------------------------------------------------------------------------
_TEMP_BYTES_PER_PX = 32   # ~8 live f32 (TH, W) temporaries inside the kernel


def _sublane_multiple(*dtypes):
    """Sublane tiling requirement: 8 for 4-byte, 16 for 2-byte, 32 for 1-byte."""
    m = 8
    for dt in dtypes:
        item = jnp.dtype(dt).itemsize
        m = max(m, 8 * max(1, 4 // max(1, item)))
    return m


def _choose_tile_rows(H, W, per_px_bytes, sub_mult,
                      budget_bytes=8 << 20, row_cap=512):
    """Rows per tile: one (inputs + outputs + temporaries) set <= ~8 MiB so the
    2x-buffered blocks plus internal scratch stay ~10-12 MiB (fits v7x's 32 MiB
    scoped VMEM with headroom, and large enough blocks for the v6e roofline)."""
    rows = budget_bytes // max(1, W * per_px_bytes)
    rows = int(min(rows, row_cap, H))
    rows = (rows // sub_mult) * sub_mult
    if rows <= 0:
        rows = min(sub_mult, H)
    if rows >= H:
        return H
    return rows


# ---------------------------------------------------------------------------
# Pallas wrapper
# ---------------------------------------------------------------------------
@functools.partial(
    jax.jit,
    static_argnames=("img_width", "img_height", "tile_rows", "has_motion",
                     "rigid", "approx", "out_dtype", "output_layout"))
def _warp_impl(intr, t_flat, depth3, motion, *, img_width, img_height,
               tile_rows, has_motion, rigid, approx, out_dtype, output_layout):
    B = depth3.shape[0]
    H, W = img_height, img_width
    TH = tile_rows
    n_row_tiles = pl.cdiv(H, TH)

    kernel = functools.partial(_warp_kernel, img_width=W, img_height=H,
                               tile_rows=TH, has_motion=has_motion,
                               rigid=rigid, approx=approx)

    in_specs = [
        pl.BlockSpec(memory_space=pltpu.MemorySpace.SMEM),      # intrinsics [B,4]
        pl.BlockSpec(memory_space=pltpu.MemorySpace.SMEM),      # T flat [B,16]
        pl.BlockSpec((1, TH, W), lambda b, r: (b, r, 0)),       # depth tile
    ]
    operands = [intr, t_flat, depth3]
    if has_motion:
        in_specs.append(pl.BlockSpec((1, 3, TH, W), lambda b, r: (b, 0, r, 0)))
        operands.append(motion)

    u_plane, v_plane = pl.pallas_call(
        kernel,
        out_shape=(jax.ShapeDtypeStruct((B, H, W), out_dtype),
                   jax.ShapeDtypeStruct((B, H, W), out_dtype)),
        grid_spec=pltpu.PrefetchScalarGridSpec(
            num_scalar_prefetch=0,
            grid=(B, n_row_tiles),
            in_specs=in_specs,
            out_specs=[pl.BlockSpec((1, TH, W), lambda b, r: (b, r, 0)),
                       pl.BlockSpec((1, TH, W), lambda b, r: (b, r, 0))],
        ),
        compiler_params=pltpu.CompilerParams(
            # TODO(synk): switch the row axis to pltpu.CORE_PARALLEL on v7x if
            # a profile shows one TensorCore idle.
            dimension_semantics=("parallel", "parallel"),
            vmem_limit_bytes=32 * 1024 * 1024),
    )(*operands)

    if output_layout == "planes":
        return u_plane, v_plane
    # torch.stack([u_norm, v_norm], dim=2).view(B, H, W, 2)
    # TODO(synk): for consumers that can take u/v planes (or a (B,H,2W) slab),
    # use output_layout="planes" and drop this extra HBM round trip.
    return jnp.stack([u_plane, v_plane], axis=-1)


def coordinate_warper(intrinsics, T, batch_depth_map, object_motion_map=None, *,
                      img_width, img_height, row_tile=None,
                      out_dtype=jnp.float32, approx_reciprocal=True,
                      rigid_transform=None, output_layout="stacked"):
    """Pallas CoordinateWarper.forward.

    intrinsics: (B, 4) [fx, fy, cx, cy] pinhole parameters per batch element.
    T:          (B, 4, 4) transform, batch_depth_map: (B, 1, H, W),
    object_motion_map: optional (B, 3, H, W).
    Returns (B, H, W, 2) normalized pixel coordinates (output_layout="stacked"),
    or the (u, v) planes as two (B, H, W) arrays (output_layout="planes").
    """
    assert output_layout in ("stacked", "planes")
    assert batch_depth_map.ndim == 4 and batch_depth_map.shape[1] == 1
    B = batch_depth_map.shape[0]
    H, W = img_height, img_width
    has_motion = object_motion_map is not None

    # Free view [B,1,H,W] -> [B,H,W]; keep native dtype (no wrapper upcast).
    depth3 = batch_depth_map[:, 0, :, :]
    t_flat = T.reshape(B, 16).astype(jnp.float32)          # tiny, SMEM
    intr = intrinsics.astype(jnp.float32)                  # tiny, SMEM

    # Rigid-transform fast path: only when T is concrete and its last row is
    # exactly [0, 0, 0, 1] (then the homogeneous coordinate is exactly 1).
    if rigid_transform is None:
        try:
            last_row = np.asarray(jax.device_get(T))[:, 3, :]
            rigid = bool(np.all(last_row ==
                                np.array([0.0, 0.0, 0.0, 1.0], last_row.dtype)))
        except Exception:       # T is a tracer (called under jit) -> general path
            rigid = False
    else:
        rigid = bool(rigid_transform)

    out_dtype = jnp.dtype(out_dtype)
    d_dt = depth3.dtype
    m_dt = object_motion_map.dtype if has_motion else d_dt
    sub_mult = _sublane_multiple(d_dt, m_dt, out_dtype)

    per_px = (jnp.dtype(d_dt).itemsize
              + (3 * jnp.dtype(m_dt).itemsize if has_motion else 0)
              + 2 * out_dtype.itemsize
              + _TEMP_BYTES_PER_PX)

    if row_tile is not None:
        TH = min(int(row_tile), H)
        if TH < H:
            TH = max((TH // sub_mult) * sub_mult, min(sub_mult, H))
    else:
        TH = _choose_tile_rows(H, W, per_px, sub_mult)
    TH = min(TH, H)

    return _warp_impl(intr, t_flat, depth3,
                      object_motion_map if has_motion else None,
                      img_width=W, img_height=H, tile_rows=TH,
                      has_motion=has_motion, rigid=rigid,
                      approx=bool(approx_reciprocal), out_dtype=out_dtype,
                      output_layout=output_layout)


# ---------------------------------------------------------------------------
# Pure-JAX reference (mirrors the PyTorch module, pinhole camera)
# ---------------------------------------------------------------------------
def _reference(intr, T, depth, img_width, img_height, motion=None):
    B = depth.shape[0]
    H, W = img_height, img_width
    u = jnp.arange(W, dtype=jnp.float32)[None, None, :]
    v = jnp.arange(H, dtype=jnp.float32)[None, :, None]
    fx = intr[:, 0][:, None, None]
    fy = intr[:, 1][:, None, None]
    cx = intr[:, 2][:, None, None]
    cy = intr[:, 3][:, None, None]
    d = depth[:, 0].astype(jnp.float32)
    x3 = d * (u - cx) / fx
    y3 = d * (v - cy) / fy
    z3 = d * jnp.ones((1, H, W), jnp.float32)
    ones = jnp.ones_like(x3)
    pc = jnp.stack([x3, y3, z3, ones], axis=1).reshape(B, 4, -1)
    tp = jnp.einsum("bij,bjk->bik", T, pc).reshape(B, 4, H, W)
    if motion is not None:
        tp = tp.at[:, :3].add(motion.astype(jnp.float32))
    xyz = tp[:, :3] / tp[:, 3:4]
    x = xyz[:, 0].reshape(B, -1)
    y = xyz[:, 1].reshape(B, -1)
    z = jnp.clip(xyz[:, 2], 1e-5, None).reshape(B, -1)
    u2 = intr[:, 0][:, None] * x / z + intr[:, 2][:, None]
    v2 = intr[:, 1][:, None] * y / z + intr[:, 3][:, None]
    un = (u2 / (W - 1) - 0.5) * 2
    vn = (v2 / (H - 1) - 0.5) * 2
    return jnp.stack([un, vn], axis=2).reshape(B, H, W, 2)


# ---------------------------------------------------------------------------
# Tests
# ---------------------------------------------------------------------------
if __name__ == "__main__":
    key = jax.random.PRNGKey(0)
    k_depth, k_motion, k_depth2, k_motion2 = jax.random.split(key, 4)

    def make_T(theta, tx, ty, tz, last_row=(0.0, 0.0, 0.0, 1.0)):
        c, s = jnp.cos(theta), jnp.sin(theta)
        return jnp.array([[c, -s, 0.0, tx],
                          [s, c, 0.0, ty],
                          [0.0, 0.0, 1.0, tz],
                          list(last_row)], jnp.float32)

    def make_intr(Wd, Hd):
        return jnp.stack([
            jnp.array([1.2 * Wd, 1.2 * Hd, (Wd - 1) / 2.0, (Hd - 1) / 2.0],
                      jnp.float32),
            jnp.array([1.5 * Wd, 1.4 * Hd, (Wd - 1) / 2.0 + 0.5,
                       (Hd - 1) / 2.0 - 0.5], jnp.float32),
        ], axis=0)

    T_rigid = jnp.stack([make_T(0.05, 0.10, -0.05, 0.20),
                         make_T(-0.08, -0.15, 0.07, 0.10)], axis=0)
    # Non-rigid last row (kept close to [0,0,0,1] so Wc stays well away from 0).
    T_gen = jnp.stack(
        [make_T(0.05, 0.10, -0.05, 0.20, last_row=(0.002, -0.001, 0.003, 1.05)),
         make_T(-0.08, -0.15, 0.07, 0.10, last_row=(-0.001, 0.002, 0.002, 0.95))],
        axis=0)

    B, H, W = 2, 16, 16
    depth = jax.random.uniform(k_depth, (B, 1, H, W), jnp.float32, 1.0, 5.0)
    motion = 0.01 * jax.random.normal(k_motion, (B, 3, H, W), jnp.float32)
    intr = make_intr(W, H)

    # --- case A: f32 depth + motion, rigid T, exact reciprocals -------------
    out = coordinate_warper(intr, T_rigid, depth, motion,
                            img_width=W, img_height=H,
                            approx_reciprocal=False)
    out = jax.block_until_ready(out)
    assert out.shape == (B, H, W, 2), out.shape
    ref = _reference(intr, T_rigid, depth, W, H, motion)
    assert jnp.allclose(out, ref, rtol=1e-4, atol=1e-4), (
        float(jnp.max(jnp.abs(out - ref))))

    # --- case B: default config (approx EUP reciprocal) — loose sanity check
    out_ap = coordinate_warper(intr, T_rigid, depth, motion,
                               img_width=W, img_height=H)
    out_ap = jax.block_until_ready(out_ap)
    assert jnp.allclose(out_ap, ref, rtol=5e-2, atol=5e-2), (
        float(jnp.max(jnp.abs(out_ap - ref))))

    # --- case C: non-rigid T, no motion (general homogeneous path) ----------
    out_g = coordinate_warper(intr, T_gen, depth, None,
                              img_width=W, img_height=H,
                              approx_reciprocal=False)
    out_g = jax.block_until_ready(out_g)
    ref_g = _reference(intr, T_gen, depth, W, H, None)
    assert jnp.allclose(out_g, ref_g, rtol=1e-4, atol=1e-4), (
        float(jnp.max(jnp.abs(out_g - ref_g))))

    # --- case D: bf16 inputs, row_tile=8 auto-rounded to the bf16 sublane
    #             multiple (16), multi-row-tile path ------------------------
    H2 = 32
    depth2 = jax.random.uniform(k_depth2, (B, 1, H2, W), jnp.float32, 1.0, 5.0)
    motion2 = 0.01 * jax.random.normal(k_motion2, (B, 3, H2, W), jnp.float32)
    depth2_bf = depth2.astype(jnp.bfloat16)
    motion2_bf = motion2.astype(jnp.bfloat16)
    intr2 = make_intr(W, H2)

    out_t = coordinate_warper(intr2, T_rigid, depth2_bf, motion2_bf,
                              img_width=W, img_height=H2, row_tile=8,
                              approx_reciprocal=False)
    out_t = jax.block_until_ready(out_t)
    ref_t = _reference(intr2, T_rigid, depth2_bf.astype(jnp.float32), W, H2,
                       motion2_bf.astype(jnp.float32))
    assert out_t.shape == (B, H2, W, 2), out_t.shape
    assert jnp.allclose(out_t, ref_t, rtol=1e-4, atol=1e-4), (
        float(jnp.max(jnp.abs(out_t - ref_t))))

    # --- case E: planes output layout (downstream-consumer path) ------------
    u_pl, v_pl = coordinate_warper(intr, T_rigid, depth, motion,
                                   img_width=W, img_height=H,
                                   approx_reciprocal=False,
                                   output_layout="planes")
    u_pl, v_pl = jax.block_until_ready((u_pl, v_pl))
    assert jnp.allclose(u_pl, ref[..., 0], rtol=1e-4, atol=1e-4)
    assert jnp.allclose(v_pl, ref[..., 1], rtol=1e-4, atol=1e-4)

    print("KERNEL_OK")
</pallas_src>

<mosaic_0001>
module attributes {stable_mosaic.version = 11 : i64} {
  func.func @_warp_kernel(%arg0: i32, %arg1: i32, %arg2: memref<2x4xf32, #tpu.memory_space<smem>>, %arg3: memref<2x16xf32, #tpu.memory_space<smem>>, %arg4: memref<1x16x16xf32, #tpu.memory_space<vmem>>, %arg5: memref<1x3x16x16xf32, #tpu.memory_space<vmem>>, %arg6: memref<1x16x16xf32, #tpu.memory_space<vmem>>, %arg7: memref<1x16x16xf32, #tpu.memory_space<vmem>>) attributes {dimension_semantics = [#tpu.dimension_semantics<parallel>, #tpu.dimension_semantics<parallel>], iteration_bounds = array<i64: 2, 1>, scalar_prefetch = 0 : i64, scratch_operands = 0 : i64, tpu.core_type = #tpu.core_type<tc>, window_params = [{transform_indices = @transform_0, window_bounds = array<i64: 2, 4>}, {transform_indices = @transform_1, window_bounds = array<i64: 2, 16>}, {transform_indices = @transform_2, window_bounds = array<i64: 1, 16, 16>}, {transform_indices = @transform_3, window_bounds = array<i64: 1, 3, 16, 16>}, {transform_indices = @transform_4, window_bounds = array<i64: 1, 16, 16>}, {transform_indices = @transform_5, window_bounds = array<i64: 1, 16, 16>}]} {
    %c16_i32 = arith.constant 16 : i32
    %0 = arith.muli %arg1, %c16_i32 : i32
    %1 = arith.index_cast %arg0 : i32 to index
    %c0 = arith.constant 0 : index
    %2 = memref.load %arg2[%1, %c0] : memref<2x4xf32, #tpu.memory_space<smem>>
    %3 = arith.index_cast %arg0 : i32 to index
    %c1 = arith.constant 1 : index
    %4 = memref.load %arg2[%3, %c1] : memref<2x4xf32, #tpu.memory_space<smem>>
    %5 = arith.index_cast %arg0 : i32 to index
    %c2 = arith.constant 2 : index
    %6 = memref.load %arg2[%5, %c2] : memref<2x4xf32, #tpu.memory_space<smem>>
    %7 = arith.index_cast %arg0 : i32 to index
    %c3 = arith.constant 3 : index
    %8 = memref.load %arg2[%7, %c3] : memref<2x4xf32, #tpu.memory_space<smem>>
    %cst = arith.constant 1.000000e+00 : f32
    %9 = arith.divf %cst, %2 : f32
    %cst_0 = arith.constant 1.000000e+00 : f32
    %10 = arith.divf %cst_0, %4 : f32
    %11 = arith.index_cast %arg0 : i32 to index
    %c0_1 = arith.constant 0 : index
    %12 = memref.load %arg3[%11, %c0_1] : memref<2x16xf32, #tpu.memory_space<smem>>
    %13 = arith.index_cast %arg0 : i32 to index
    %c1_2 = arith.constant 1 : index
    %14 = memref.load %arg3[%13, %c1_2] : memref<2x16xf32, #tpu.memory_space<smem>>
    %15 = arith.index_cast %arg0 : i32 to index
    %c2_3 = arith.constant 2 : index
    %16 = memref.load %arg3[%15, %c2_3] : memref<2x16xf32, #tpu.memory_space<smem>>
    %17 = arith.index_cast %arg0 : i32 to index
    %c3_4 = arith.constant 3 : index
    %18 = memref.load %arg3[%17, %c3_4] : memref<2x16xf32, #tpu.memory_space<smem>>
    %19 = arith.index_cast %arg0 : i32 to index
    %c4 = arith.constant 4 : index
    %20 = memref.load %arg3[%19, %c4] : memref<2x16xf32, #tpu.memory_space<smem>>
    %21 = arith.index_cast %arg0 : i32 to index
    %c5 = arith.constant 5 : index
    %22 = memref.load %arg3[%21, %c5] : memref<2x16xf32, #tpu.memory_space<smem>>
    %23 = arith.index_cast %arg0 : i32 to index
    %c6 = arith.constant 6 : index
    %24 = memref.load %arg3[%23, %c6] : memref<2x16xf32, #tpu.memory_space<smem>>
    %25 = arith.index_cast %arg0 : i32 to index
    %c7 = arith.constant 7 : index
    %26 = memref.load %arg3[%25, %c7] : memref<2x16xf32, #tpu.memory_space<smem>>
    %27 = arith.index_cast %arg0 : i32 to index
    %c8 = arith.constant 8 : index
    %28 = memref.load %arg3[%27, %c8] : memref<2x16xf32, #tpu.memory_space<smem>>
    %29 = arith.index_cast %arg0 : i32 to index
    %c9 = arith.constant 9 : index
    %30 = memref.load %arg3[%29, %c9] : memref<2x16xf32, #tpu.memory_space<smem>>
    %31 = arith.index_cast %arg0 : i32 to index
    %c10 = arith.constant 10 : index
    %32 = memref.load %arg3[%31, %c10] : memref<2x16xf32, #tpu.memory_space<smem>>
    %33 = arith.index_cast %arg0 : i32 to index
    %c11 = arith.constant 11 : index
    %34 = memref.load %arg3[%33, %c11] : memref<2x16xf32, #tpu.memory_space<smem>>
    %c0_5 = arith.constant 0 : index
    %c0_6 = arith.constant 0 : index
    %c0_7 = arith.constant 0 : index
    %35 = vector.load %arg4[%c0_5, %c0_6, %c0_7] : memref<1x16x16xf32, #tpu.memory_space<vmem>>, vector<1x16x16xf32>
    %36 = vector.shape_cast %35 : vector<1x16x16xf32> to vector<16x16xf32>
    %37 = tpu.iota {dimensions = array<i32: 1>} : vector<16x16xi32>
    %38 = arith.sitofp %37 : vector<16x16xi32> to vector<16x16xf32>
    %39 = tpu.iota {dimensions = array<i32: 0>} : vector<16x16xi32>
    %40 = vector.broadcast %0 : i32 to vector<16x16xi32>
    %41 = arith.addi %39, %40 : vector<16x16xi32>
    %42 = arith.sitofp %41 : vector<16x16xi32> to vector<16x16xf32>
    %43 = arith.mulf %12, %9 : f32
    %44 = arith.mulf %14, %10 : f32
    %45 = arith.mulf %43, %6 : f32
    %46 = arith.subf %16, %45 : f32
    %47 = arith.mulf %44, %8 : f32
    %48 = arith.subf %46, %47 : f32
    %49 = vector.broadcast %43 : f32 to vector<16x16xf32>
    %50 = arith.mulf %49, %38 : vector<16x16xf32>
    %51 = vector.broadcast %44 : f32 to vector<16x16xf32>
    %52 = arith.mulf %51, %42 : vector<16x16xf32>
    %53 = arith.addf %50, %52 : vector<16x16xf32>
    %54 = vector.broadcast %48 : f32 to vector<16x16xf32>
    %55 = arith.addf %53, %54 : vector<16x16xf32>
    %56 = arith.mulf %36, %55 : vector<16x16xf32>
    %57 = vector.broadcast %18 : f32 to vector<16x16xf32>
    %58 = arith.addf %56, %57 : vector<16x16xf32>
    %59 = arith.mulf %20, %9 : f32
    %60 = arith.mulf %22, %10 : f32
    %61 = arith.mulf %59, %6 : f32
    %62 = arith.subf %24, %61 : f32
    %63 = arith.mulf %60, %8 : f32
    %64 = arith.subf %62, %63 : f32
    %65 = vector.broadcast %59 : f32 to vector<16x16xf32>
    %66 = arith.mulf %65, %38 : vector<16x16xf32>
    %67 = vector.broadcast %60 : f32 to vector<16x16xf32>
    %68 = arith.mulf %67, %42 : vector<16x16xf32>
    %69 = arith.addf %66, %68 : vector<16x16xf32>
    %70 = vector.broadcast %64 : f32 to vector<16x16xf32>
    %71 = arith.addf %69, %70 : vector<16x16xf32>
    %72 = arith.mulf %36, %71 : vector<16x16xf32>
    %73 = vector.broadcast %26 : f32 to vector<16x16xf32>
    %74 = arith.addf %72, %73 : vector<16x16xf32>
    %75 = arith.mulf %28, %9 : f32
    %76 = arith.mulf %30, %10 : f32
    %77 = arith.mulf %75, %6 : f32
    %78 = arith.subf %32, %77 : f32
    %79 = arith.mulf %76, %8 : f32
    %80 = arith.subf %78, %79 : f32
    %81 = vector.broadcast %75 : f32 to vector<16x16xf32>
    %82 = arith.mulf %81, %38 : vector<16x16xf32>
    %83 = vector.broadcast %76 : f32 to vector<16x16xf32>
    %84 = arith.mulf %83, %42 : vector<16x16xf32>
    %85 = arith.addf %82, %84 : vector<16x16xf32>
    %86 = vector.broadcast %80 : f32 to vector<16x16xf32>
    %87 = arith.addf %85, %86 : vector<16x16xf32>
    %88 = arith.mulf %36, %87 : vector<16x16xf32>
    %89 = vector.broadcast %34 : f32 to vector<16x16xf32>
    %90 = arith.addf %88, %89 : vector<16x16xf32>
    %c0_8 = arith.constant 0 : index
    %c0_9 = arith.constant 0 : index
    %c0_10 = arith.constant 0 : index
    %c0_11 = arith.constant 0 : index
    %91 = vector.load %arg5[%c0_8, %c0_9, %c0_10, %c0_11] : memref<1x3x16x16xf32, #tpu.memory_space<vmem>>, vector<1x1x16x16xf32>
    %92 = vector.shape_cast %91 : vector<1x1x16x16xf32> to vector<16x16xf32>
    %93 = arith.addf %58, %92 : vector<16x16xf32>
    %c0_12 = arith.constant 0 : index
    %c1_13 = arith.constant 1 : index
    %c0_14 = arith.constant 0 : index
    %c0_15 = arith.constant 0 : index
    %94 = vector.load %arg5[%c0_12, %c1_13, %c0_14, %c0_15] : memref<1x3x16x16xf32, #tpu.memory_space<vmem>>, vector<1x1x16x16xf32>
    %95 = vector.shape_cast %94 : vector<1x1x16x16xf32> to vector<16x16xf32>
    %96 = arith.addf %74, %95 : vector<16x16xf32>
    %c0_16 = arith.constant 0 : index
    %c2_17 = arith.constant 2 : index
    %c0_18 = arith.constant 0 : index
    %c0_19 = arith.constant 0 : index
    %97 = vector.load %arg5[%c0_16, %c2_17, %c0_18, %c0_19] : memref<1x3x16x16xf32, #tpu.memory_space<vmem>>, vector<1x1x16x16xf32>
    %98 = vector.shape_cast %97 : vector<1x1x16x16xf32> to vector<16x16xf32>
    %99 = arith.addf %90, %98 : vector<16x16xf32>
    %cst_20 = arith.constant 9.99999974E-6 : f32
    %100 = vector.broadcast %cst_20 : f32 to vector<16x16xf32>
    %101 = arith.maximumf %99, %100 : vector<16x16xf32>
    %102 = tpu.reciprocal %101 : vector<16x16xf32> -> vector<16x16xf32>
    %cst_21 = arith.constant 0.13333334 : f32
    %103 = arith.mulf %2, %cst_21 : f32
    %cst_22 = arith.constant 0.13333334 : f32
    %104 = arith.mulf %4, %cst_22 : f32
    %cst_23 = arith.constant 0.13333334 : f32
    %105 = arith.mulf %6, %cst_23 : f32
    %cst_24 = arith.constant 1.000000e+00 : f32
    %106 = arith.subf %105, %cst_24 : f32
    %cst_25 = arith.constant 0.13333334 : f32
    %107 = arith.mulf %8, %cst_25 : f32
    %cst_26 = arith.constant 1.000000e+00 : f32
    %108 = arith.subf %107, %cst_26 : f32
    %109 = arith.mulf %93, %102 : vector<16x16xf32>
    %110 = vector.broadcast %103 : f32 to vector<16x16xf32>
    %111 = arith.mulf %110, %109 : vector<16x16xf32>
    %112 = vector.broadcast %106 : f32 to vector<16x16xf32>
    %113 = arith.addf %111, %112 : vector<16x16xf32>
    %c0_27 = arith.constant 0 : index
    %c0_28 = arith.constant 0 : index
    %c0_29 = arith.constant 0 : index
    %114 = vector.load %arg6[%c0_27, %c0_28, %c0_29] : memref<1x16x16xf32, #tpu.memory_space<vmem>>, vector<1x16x16xf32>
    %115 = vector.shape_cast %114 : vector<1x16x16xf32> to vector<16x16xf32>
    %116 = vector.shape_cast %113 : vector<16x16xf32> to vector<1x16x16xf32>
    tpu.vector_store %arg6[%c0_27, %c0_28, %c0_29], %116 {strides = array<i32>} : memref<1x16x16xf32, #tpu.memory_space<vmem>>, vector<1x16x16xf32>,
    %117 = arith.mulf %96, %102 : vector<16x16xf32>
    %118 = vector.broadcast %104 : f32 to vector<16x16xf32>
    %119 = arith.mulf %118, %117 : vector<16x16xf32>
    %120 = vector.broadcast %108 : f32 to vector<16x16xf32>
    %121 = arith.addf %119, %120 : vector<16x16xf32>
    %c0_30 = arith.constant 0 : index
    %c0_31 = arith.constant 0 : index
    %c0_32 = arith.constant 0 : index
    %122 = vector.load %arg7[%c0_30, %c0_31, %c0_32] : memref<1x16x16xf32, #tpu.memory_space<vmem>>, vector<1x16x16xf32>
    %123 = vector.shape_cast %122 : vector<1x16x16xf32> to vector<16x16xf32>
    %124 = vector.shape_cast %121 : vector<16x16xf32> to vector<1x16x16xf32>
    tpu.vector_store %arg7[%c0_30, %c0_31, %c0_32], %124 {strides = array<i32>} : memref<1x16x16xf32, #tpu.memory_space<vmem>>, vector<1x16x16xf32>,
    return
  }
  func.func @transform_0(%arg0: i32, %arg1: i32) -> (i32, i32) {
    %c0_i32 = arith.constant 0 : i32
    %c0_i32_0 = arith.constant 0 : i32
    %c0_i32_1 = arith.constant 0 : i32
    return %c0_i32, %c0_i32_0 : i32, i32
  }
  func.func @transform_1(%arg0: i32, %arg1: i32) -> (i32, i32) {
    %c0_i32 = arith.constant 0 : i32
    %c0_i32_0 = arith.constant 0 : i32
    %c0_i32_1 = arith.constant 0 : i32
    return %c0_i32, %c0_i32_0 : i32, i32
  }
  func.func @transform_2(%arg0: i32, %arg1: i32) -> (i32, i32, i32) {
    %c0_i32 = arith.constant 0 : i32
    %c0_i32_0 = arith.constant 0 : i32
    return %arg0, %arg1, %c0_i32 : i32, i32, i32
  }
  func.func @transform_3(%arg0: i32, %arg1: i32) -> (i32, i32, i32, i32) {
    %c0_i32 = arith.constant 0 : i32
    %c0_i32_0 = arith.constant 0 : i32
    %c0_i32_1 = arith.constant 0 : i32
    return %arg0, %c0_i32, %arg1, %c0_i32_0 : i32, i32, i32, i32
  }
  func.func @transform_4(%arg0: i32, %arg1: i32) -> (i32, i32, i32) {
    %c0_i32 = arith.constant 0 : i32
    %c0_i32_0 = arith.constant 0 : i32
    return %arg0, %arg1, %c0_i32 : i32, i32, i32
  }
  func.func @transform_5(%arg0: i32, %arg1: i32) -> (i32, i32, i32) {
    %c0_i32 = arith.constant 0 : i32
    %c0_i32_0 = arith.constant 0 : i32
    return %arg0, %arg1, %c0_i32 : i32, i32, i32
  }
}

</mosaic_0001>

<llo_original>
// kernel: _warp_impl.1
$region0: #{_warp_impl.1}
  #allocation0 [shape = 'u32[]', space=smem, size = 0x4, offset = 0x4, fixed_abs, tag = 'smem constant byte address 0x4 - core index']
  #allocation1 [shape = 'u32[72,128]{1,0:T(1,128)}', space=vmem, size = 0x9000, scoped, tag = 'internal scratch']
  %s0 = inlined_call_operand.hbm [shape: f32[2,4], index: 0, kind: input, shape index: {}]
  %s1 = inlined_call_operand.hbm [shape: f32[2,16], index: 1, kind: input, shape index: {}]
  %s2 = inlined_call_operand.hbm [shape: f32[2,16,16], index: 2, kind: input, shape index: {}]
  %s3 = inlined_call_operand.hbm [shape: f32[2,3,16,16], index: 3, kind: input, shape index: {}]
  %s4 = inlined_call_operand.vmem [shape: f32[2,16,16], index: 4, kind: output, shape index: {0}]
  %s5 = inlined_call_operand.vmem [shape: f32[2,16,16], index: 5, kind: output, shape index: {1}]
  %6 = xla_tuple %s4, %s5
  %s7 = sld [smem:[#allocation0]]
  $region73: #{_warp_impl.1} parent=0
    _
  %s9 = ssub.s32 1, %s7
  %s10 = scalar_select 0, %s9, %s7
  $region1: #{_warp_impl.1} parent=0
    #allocation2 [shape = 'u8[1024]{0}', space=smem, size = 0x400, scoped, tag = 'input window, operand 0, single buffered']
    #allocation3 [shape = 's32[2]{0}', space=sflag, size = 0x8, scoped, tag = 'scoped memory for _warp_impl.1']
    #allocation4 [shape = 's32[2]{0}', space=sflag, size = 0x8, scoped, tag = 'scoped memory for _warp_impl.1']
    #allocation5 [shape = 'u8[1024]{0}', space=smem, size = 0x400, scoped, tag = 'input window, operand 1, single buffered']
    #allocation6 [shape = 's32[1]{0}', space=sflag, size = 0x4, scoped, tag = 'scoped memory for _warp_impl.1']
    #allocation7 [shape = 'u8[16384]{0}', space=vmem, size = 0x4000, scoped, tag = 'input window, operand 2']
    #allocation8 [shape = 'u8[49152]{0}', space=vmem, size = 0xc000, scoped, tag = 'input window, operand 3']
    #allocation9 [shape = 's32[2]{0}', space=sflag, size = 0x8, scoped, tag = 'scoped memory for _warp_impl.1']
    %11 = vsyncpa [#allocation4], 0
    %12 = vsyncpa [#allocation6], 0
    %13 = vsyncpa [#allocation3], 0
    %s14 = scalar_lea.sflag [#allocation3], 1
    %15 = vsyncpa %s14, 0
    %16 = vsyncpa [#allocation9], 0
    %s17 = scalar_lea.sflag [#allocation9], 1
    %18 = vsyncpa %s17, 0
    loop: start=0, step=1, limit=4
    $region2: #{_warp_impl.1} parent=1 // loop_pre_header
      _
    $region3: #{_warp_impl.1} parent=1 // loop_header
      %s20 = sphi 0, %s24
      %p21 = scmp.ge.s32.totalorder %s20, 4
      %s27 = sphi 0, %s39
      %s28 = sphi 0, %s35
      %s29 = sphi 0, %s27
      %s30 = sphi 0, %s28
      %s31 = sphi 0, %s29
      %s32 = sphi 0, %s30
      %s40 = sphi 0, %s40
      %s42 = sphi 0, %s40
      %s43 = sphi 0, %s42
      %s57 = sphi 0, %s43
      %s61 = sphi 0, %s61
      %s63 = sphi 0, %s61
      %s64 = sphi 0, %s63
      %s78 = sphi 0, %s64
      %s86 = sphi 0, %s88
      %s89 = sphi 0, %s86
      %s90 = sphi 0, %s89
      %s106 = sphi 0, %s90
      %s114 = sphi 0, %s116
      %s117 = sphi 0, %s114
      %s118 = sphi 0, %s117
      %s134 = sphi 0, %s118
      %s142 = sphi 0, %s144
      %s145 = sphi 0, %s142
      %s146 = sphi 0, %s145
      %s162 = sphi 0, %s146
      %s170 = sphi 0, %s172
      %s173 = sphi 0, %s170
      %s174 = sphi 0, %s173
      %s190 = sphi 0, %s174
    $region4: #{_warp_impl.1} parent=1 // loop_header_branch
      %23 = sbr.rel (%p21) target = $region8
    $region5: #{_warp_impl.1} parent=1 // loop_body
      %s25 = ssub.s32 %s20, 1
      %s26 = ssub.s32 %s20, 2
      %s33 = sadd.s32 1, %s28
      %p34 = scmp.ge.s32.totalorder %s33, 1
      %s35 = scalar_select %p34, 0, %s33
      %s36 = sadd.s32 1, %s27
      %s37 = scalar_select %p34, %s36, %s27
      %p38 = scmp.ge.s32.totalorder %s37, 2
      %s39 = scalar_select %p38, 0, %s37
      %s41 = sadd.s32 %s40, 1
      %p44 = scmp.eq.s32.totalorder %s20, 1
      %p45 = scmp.ne.s32.totalorder %s40, %s42
      %p46 = scmp.eq.s32.totalorder %s20, 0
      %p47 = por %p45, %p46
      %p48 = scmp.ne.s32.totalorder %s40, %s42
      %p49 = scmp.eq.s32.totalorder %s25, 1
      %p50 = por %p48, %p49
      %p51 = scmp.ne.s32.totalorder %s42, %s43
      %p52 = scmp.eq.s32.totalorder %s25, 0
      %p53 = por %p51, %p52
      %p54 = scmp.ne.s32.totalorder %s42, %s43
      %p55 = scmp.eq.s32.totalorder %s26, 1
      %p56 = por %p54, %p55
      %p58 = scmp.ne.s32.totalorder %s43, %s57
      %p59 = scmp.eq.s32.totalorder %s26, 0
      %p60 = por %p58, %p59
      %s62 = sadd.s32 %s61, 1
      %p65 = scmp.eq.s32.totalorder %s20, 1
      %p66 = scmp.ne.s32.totalorder %s61, %s63
      %p67 = scmp.eq.s32.totalorder %s20, 0
      %p68 = por %p66, %p67
      %p69 = scmp.ne.s32.totalorder %s61, %s63
      %p70 = scmp.eq.s32.totalorder %s25, 1
      %p71 = por %p69, %p70
      %p72 = scmp.ne.s32.totalorder %s63, %s64
      %p73 = scmp.eq.s32.totalorder %s25, 0
      %p74 = por %p72, %p73
      %p75 = scmp.ne.s32.totalorder %s63, %s64
      %p76 = scmp.eq.s32.totalorder %s26, 1
      %p77 = por %p75, %p76
      %p79 = scmp.ne.s32.totalorder %s64, %s78
      %p80 = scmp.eq.s32.totalorder %s26, 0
      %p81 = por %p79, %p80
      %s82 = ssub.s32 %s27, %s39
      %s83 = ssub.s32 %s28, %s35
      %s84 = sor.u32 %s82, %s83
      %p85 = scmp.eq.s32.totalorder %s84, 0
      %s87 = sadd.s32 %s86, 1
      %s88 = scalar_select %p85, %s86, %s87
      %p91 = pneg %p85
      %p92 = scmp.eq.s32.totalorder %s20, 1
      %p93 = por %p91, %p92
      %p94 = scmp.ne.s32.totalorder %s86, %s89
      %p95 = scmp.eq.s32.totalorder %s20, 0
      %p96 = por %p94, %p95
      %p97 = scmp.ne.s32.totalorder %s86, %s89
      %p98 = scmp.eq.s32.totalorder %s25, 1
      %p99 = por %p97, %p98
      %p100 = scmp.ne.s32.totalorder %s89, %s90
      %p101 = scmp.eq.s32.totalorder %s25, 0
      %p102 = por %p100, %p101
      %p103 = scmp.ne.s32.totalorder %s89, %s90
      %p104 = scmp.eq.s32.totalorder %s26, 1
      %p105 = por %p103, %p104
      %p107 = scmp.ne.s32.totalorder %s90, %s106
      %p108 = scmp.eq.s32.totalorder %s26, 0
      %p109 = por %p107, %p108
      %s110 = ssub.s32 %s27, %s39
      %s111 = ssub.s32 %s28, %s35
      %s112 = sor.u32 %s110, %s111
      %p113 = scmp.eq.s32.totalorder %s112, 0
      %s115 = sadd.s32 %s114, 1
      %s116 = scalar_select %p113, %s114, %s115
      %p119 = pneg %p113
      %p120 = scmp.eq.s32.totalorder %s20, 1
      %p121 = por %p119, %p120
      %p122 = scmp.ne.s32.totalorder %s114, %s117
      %p123 = scmp.eq.s32.totalorder %s20, 0
      %p124 = por %p122, %p123
      %p125 = scmp.ne.s32.totalorder %s114, %s117
      %p126 = scmp.eq.s32.totalorder %s25, 1
      %p127 = por %p125, %p126
      %p128 = scmp.ne.s32.totalorder %s117, %s118
      %p129 = scmp.eq.s32.totalorder %s25, 0
      %p130 = por %p128, %p129
      %p131 = scmp.ne.s32.totalorder %s117, %s118
      %p132 = scmp.eq.s32.totalorder %s26, 1
      %p133 = por %p131, %p132
      %p135 = scmp.ne.s32.totalorder %s118, %s134
      %p136 = scmp.eq.s32.totalorder %s26, 0
      %p137 = por %p135, %p136
      %s138 = ssub.s32 %s27, %s39
      %s139 = ssub.s32 %s28, %s35
      %s140 = sor.u32 %s138, %s139
      %p141 = scmp.eq.s32.totalorder %s140, 0
      %s143 = sadd.s32 %s142, 1
      %s144 = scalar_select %p141, %s142, %s143
      %p147 = pneg %p141
      %p148 = scmp.eq.s32.totalorder %s20, 1
      %p149 = por %p147, %p148
      %p150 = scmp.ne.s32.totalorder %s142, %s145
      %p151 = scmp.eq.s32.totalorder %s20, 0
      %p152 = por %p150, %p151
      %p153 = scmp.ne.s32.totalorder %s142, %s145
      %p154 = scmp.eq.s32.totalorder %s25, 1
      %p155 = por %p153, %p154
      %p156 = scmp.ne.s32.totalorder %s145, %s146
      %p157 = scmp.eq.s32.totalorder %s25, 0
      %p158 = por %p156, %p157
      %p159 = scmp.ne.s32.totalorder %s145, %s146
      %p160 = scmp.eq.s32.totalorder %s26, 1
      %p161 = por %p159, %p160
      %p163 = scmp.ne.s32.totalorder %s146, %s162
      %p164 = scmp.eq.s32.totalorder %s26, 0
      %p165 = por %p163, %p164
      %s166 = ssub.s32 %s27, %s39
      %s167 = ssub.s32 %s28, %s35
      %s168 = sor.u32 %s166, %s167
      %p169 = scmp.eq.s32.totalorder %s168, 0
      %s171 = sadd.s32 %s170, 1
      %s172 = scalar_select %p169, %s170, %s171
      %p175 = pneg %p169
      %p176 = scmp.eq.s32.totalorder %s20, 1
      %p177 = por %p175, %p176
      %p178 = scmp.ne.s32.totalorder %s170, %s173
      %p179 = scmp.eq.s32.totalorder %s20, 0
      %p180 = por %p178, %p179
      %p181 = scmp.ne.s32.totalorder %s170, %s173
      %p182 = scmp.eq.s32.totalorder %s25, 1
      %p183 = por %p181, %p182
      %p184 = scmp.ne.s32.totalorder %s173, %s174
      %p185 = scmp.eq.s32.totalorder %s25, 0
      %p186 = por %p184, %p185
      %p187 = scmp.ne.s32.totalorder %s173, %s174
      %p188 = scmp.eq.s32.totalorder %s26, 1
      %p189 = por %p187, %p188
      %p191 = scmp.ne.s32.totalorder %s174, %s190
      %p192 = scmp.eq.s32.totalorder %s26, 0
      %p193 = por %p191, %p192
      %p194 = scmp.le.s32.totalorder 1, %s20
      %p195 = scmp.lt.s32.totalorder %s20, 3
      %p196 = pnand %p194, %p195
      %p197 = pneg %p196
      // Predicated region
      $region9: #{_warp_impl.1} parent=5 // pred_check
        _
      $region10: #{_warp_impl.1} parent=5 // pred_check_branch
        %199 = sbr.rel (%p196) target = $region12
      $region11: #{_warp_impl.1} parent=5 // pred_region
        %s200 = ssub.s32 %s20, 1
        // Predicated region
        $region13: #{_warp_impl.1} parent=11 // pred_check
          %p201 = pneg %p53
        $region14: #{_warp_impl.1} parent=11 // pred_check_branch
          %203 = sbr.rel (%p201) target = $region16
        $region15: #{_warp_impl.1} parent=11 // pred_region
          %205 = vsyncadd [#allocation4], 0
          %s207 = sshll.u32 %s0, 4
          %s208 = int_to_ptr.hbm [resolvable:$true] %s207
          %210 = dma.hbm_to_smem %s208, 32, [#allocation2], [#allocation4]
        $region16: #{_warp_impl.1} parent=11 // pred_fallthru
          _
        // Predicated region
        $region17: #{_warp_impl.1} parent=11 // pred_check
          %p211 = pneg %p74
        $region18: #{_warp_impl.1} parent=11 // pred_check_branch
          %213 = sbr.rel (%p211) target = $region20
        $region19: #{_warp_impl.1} parent=11 // pred_region
          %215 = vsyncadd [#allocation6], 0
          %s217 = sshll.u32 %s1, 4
          %s218 = int_to_ptr.hbm [resolvable:$true] %s217
          %220 = dma.hbm_to_smem %s218, 32, [#allocation5], [#allocation6]
        $region20: #{_warp_impl.1} parent=11 // pred_fallthru
          _
      $region12: #{_warp_impl.1} parent=5 // pred_fallthru
        _
      %p221 = scmp.lt.s32.totalorder %s20, 2
      // Predicated region
      $region21: #{_warp_impl.1} parent=5 // pred_check
        %p222 = pneg %p221
      $region22: #{_warp_impl.1} parent=5 // pred_check_branch
        %224 = sbr.rel (%p222) target = $region24
      $region23: #{_warp_impl.1} parent=5 // pred_region
        // Predicated region
        $region25: #{_warp_impl.1} parent=23 // pred_check
          %p225 = pneg %p96
        $region26: #{_warp_impl.1} parent=23 // pred_check_branch
          %227 = sbr.rel (%p225) target = $region28
        $region27: #{_warp_impl.1} parent=23 // pred_region
          %s228 = sand.u32 %s86, 1
          %s229 = scalar_lea.sflag [#allocation3], %s228
          %s230 = sand.u32 %s86, 1
          %s231 = smul.addr %s230, 16
          %s232 = scalar_lea.vmem [#allocation7], %s231
          %s233 = smul.u32 2, %s28
          %235 = vsyncadd %s229, 0
          %s236 = smul.addr %s27, 2
          %s237 = sadd.s32 %s233, %s236
          %s238 = smul.addr %s237, 8
          %s239 = scalar_lea.hbm %s2, %s238
          %s240 = sshll.u32 %s239, 4
          %s241 = int_to_ptr.hbm [resolvable:$true] %s240
          %s242 = sshll.u32 %s232, 4
          %s243 = int_to_ptr.vmem [resolvable:$true] %s242
          %248 = dma.hbm_to_vmem [thread:$0]  %s241, 256, %s243, %s229, 128, 128, 8
        $region28: #{_warp_impl.1} parent=23 // pred_fallthru
          _
        // Predicated region
        $region29: #{_warp_impl.1} parent=23 // pred_check
          %p249 = pneg %p124
        $region30: #{_warp_impl.1} parent=23 // pred_check_branch
          %251 = sbr.rel (%p249) target = $region32
        $region31: #{_warp_impl.1} parent=23 // pred_region
          %s252 = sand.u32 %s114, 1
          %s253 = scalar_lea.sflag [#allocation9], %s252
          %s254 = sand.u32 %s114, 1
          %s255 = smul.addr %s254, 48
          %s256 = scalar_lea.vmem [#allocation8], %s255
          %s257 = smul.u32 2, %s28
          %259 = vsyncadd %s253, 0
          %s260 = smul.addr %s27, 6
          %s261 = sadd.s32 %s257, %s260
          %s262 = smul.addr %s261, 8
          %s263 = scalar_lea.hbm %s3, %s262
          %s264 = sshll.u32 %s263, 4
          %s265 = int_to_ptr.hbm [resolvable:$true] %s264
          %s266 = sshll.u32 %s256, 4
          %s267 = int_to_ptr.vmem [resolvable:$true] %s266
          %272 = dma.hbm_to_vmem [thread:$0]  %s265, 768, %s267, %s253, 128, 128, 8
        $region32: #{_warp_impl.1} parent=23 // pred_fallthru
          _
      $region24: #{_warp_impl.1} parent=5 // pred_fallthru
        _
      %p273 = scmp.le.s32.totalorder 1, %s20
      %p274 = scmp.lt.s32.totalorder %s20, 3
      %p275 = pnand %p273, %p274
      %p276 = pneg %p275
      // Predicated region
      $region33: #{_warp_impl.1} parent=5 // pred_check
        _
      $region34: #{_warp_impl.1} parent=5 // pred_check_branch
        %278 = sbr.rel (%p275) target = $region36
      $region35: #{_warp_impl.1} parent=5 // pred_region
        %s279 = ssub.s32 %s20, 1
        // Predicated region
        $region37: #{_warp_impl.1} parent=35 // pred_check
          %p280 = pneg %p53
        $region38: #{_warp_impl.1} parent=35 // pred_check_branch
          %282 = sbr.rel (%p280) target = $region40
        $region39: #{_warp_impl.1} parent=35 // pred_region
          %284 = dma.done [#allocation4], 32
        $region40: #{_warp_impl.1} parent=35 // pred_fallthru
          _
        // Predicated region
        $region41: #{_warp_impl.1} parent=35 // pred_check
          %p285 = pneg %p74
        $region42: #{_warp_impl.1} parent=35 // pred_check_branch
          %287 = sbr.rel (%p285) target = $region44
        $region43: #{_warp_impl.1} parent=35 // pred_region
          %289 = dma.done [#allocation6], 32
        $region44: #{_warp_impl.1} parent=35 // pred_fallthru
          _
        %s290 = sand.u32 %s89, 1
        %s291 = scalar_lea.sflag [#allocation3], %s290
        %s292 = sand.u32 %s89, 1
        %s293 = smul.addr %s292, 16
        %s294 = scalar_lea.vmem [#allocation7], %s293
        // Predicated region
        $region45: #{_warp_impl.1} parent=35 // pred_check
          %p295 = pneg %p102
        $region46: #{_warp_impl.1} parent=35 // pred_check_branch
          %297 = sbr.rel (%p295) target = $region48
        $region47: #{_warp_impl.1} parent=35 // pred_region
          %299 = dma.done %s291, 256
        $region48: #{_warp_impl.1} parent=35 // pred_fallthru
          _
        %s300 = sand.u32 %s117, 1
        %s301 = scalar_lea.sflag [#allocation9], %s300
        %s302 = sand.u32 %s117, 1
        %s303 = smul.addr %s302, 48
        %s304 = scalar_lea.vmem [#allocation8], %s303
        // Predicated region
        $region49: #{_warp_impl.1} parent=35 // pred_check
          %p305 = pneg %p130
        $region50: #{_warp_impl.1} parent=35 // pred_check_branch
          %307 = sbr.rel (%p305) target = $region52
        $region51: #{_warp_impl.1} parent=35 // pred_region
          %309 = dma.done %s301, 768
        $region52: #{_warp_impl.1} parent=35 // pred_fallthru
          _
        %310 = sfence
        %p311 = pneg %p53
        %p312 = pneg %p50
        %p313 = pneg %p74
        %p314 = pneg %p71
        %s315 = sand.u32 %s89, 1
        %s316 = scalar_lea.sflag [#allocation3], %s315
        %s317 = sand.u32 %s89, 1
        %s318 = smul.addr %s317, 16
        %s319 = scalar_lea.vmem [#allocation7], %s318
        %p320 = pneg %p102
        %p321 = pneg %p99
        %s322 = sand.u32 %s117, 1
        %s323 = scalar_lea.sflag [#allocation9], %s322
        %s324 = sand.u32 %s117, 1
        %s325 = smul.addr %s324, 48
        %s326 = scalar_lea.vmem [#allocation8], %s325
        %p327 = pneg %p130
        %p328 = pneg %p127
        %p329 = pneg %p158
        %p330 = pneg %p155
        %s331 = smul.u32 2, %s30
        %p332 = scmp.lt.s32.totalorder %s29, 1
        %s333 = scalar_select %p332, %s29, 1
        %p334 = scmp.lt.s32.totalorder %s331, 1
        %s335 = scalar_select %p334, %s331, 1
        %s336 = smul.addr %s333, 2
        %s337 = sadd.s32 %s335, %s336
        %s338 = smul.addr %s337, 8
        %s339 = scalar_lea.vmem %s4, %s338
        %p340 = pneg %p186
        %p341 = pneg %p183
        %s342 = smul.u32 2, %s30
        %p343 = scmp.lt.s32.totalorder %s29, 1
        %s344 = scalar_select %p343, %s29, 1
        %p345 = scmp.lt.s32.totalorder %s342, 1
        %s346 = scalar_select %p345, %s342, 1
        %s347 = smul.addr %s344, 2
        %s348 = sadd.s32 %s346, %s347
        %s349 = smul.addr %s348, 8
        %s350 = scalar_lea.vmem %s5, %s349
        %s351 = smul.u32 2, %s30
        %s352 = smul.u32 2, %s30
        %s353 = smul.u32 2, %s30
        %p354 = scmp.lt.s32.totalorder %s29, 1
        %s355 = scalar_select %p354, %s29, 1
        %p356 = scmp.lt.s32.totalorder %s353, 1
        %s357 = scalar_select %p356, %s353, 1
        %s358 = smul.addr %s355, 2
        %s359 = sadd.s32 %s357, %s358
        %s360 = smul.addr %s359, 8
        %s361 = scalar_lea.vmem %s4, %s360
        %s362 = smul.u32 2, %s30
        %s363 = smul.u32 2, %s30
        %p364 = scmp.lt.s32.totalorder %s29, 1
        %s365 = scalar_select %p364, %s29, 1
        %p366 = scmp.lt.s32.totalorder %s363, 1
        %s367 = scalar_select %p366, %s363, 1
        %s368 = smul.addr %s365, 2
        %s369 = sadd.s32 %s367, %s368
        %s370 = smul.addr %s369, 8
        %s371 = scalar_lea.vmem %s5, %s370
        %s372 = smul.u32 2, %s30
        %s373 = smul.u32 %s30, 16
        %s374 = smul.u32 %s29, 128
        %s375 = sld [smem:[#allocation2 + %s374]]
        %s376 = sadd.s32 %s374, 1
        %s377 = sld [smem:[#allocation2 + %s376]]
        %s378 = sadd.s32 %s374, 2
        %s379 = sld [smem:[#allocation2 + %s378]]
        %s380 = sadd.s32 %s374, 3
        %s381 = sld [smem:[#allocation2 + %s380]]
        %v382 = vstv %s375
        %v383 = vrcp.pop %v382
        %v384 = vmul.f32 %v382, %v383
        %v385 = vsub.f32 1.0, %v384
        %v386 = vmul.f32 %v383, %v385
        %v387 = vadd.f32 %v383, %v386
        %vm388 = vweird.f32 %v382
        %vm389 = vweird.f32 %v383
        %vm390 = vmor %vm388, %vm389
        %v391 = vsel %vm390, %v383, %v387
        %v392 = vand.u32 2147483647, %v382
        %vm393 = vcmp.eq.f32.partialorder %v392, 8.507059e+37
        %v394 = vand.u32 %v382, 2147483648
        %v395 = vor.u32 1.1754944e-38, %v394
        %v396 = vsel %vm393, %v395, %v391
        %s397 = vtos %v396
        %v398 = vstv %s377
        %v399 = vrcp.pop %v398
        %v400 = vmul.f32 %v398, %v399
        %v401 = vsub.f32 1.0, %v400
        %v402 = vmul.f32 %v399, %v401
        %v403 = vadd.f32 %v399, %v402
        %vm404 = vweird.f32 %v398
        %vm405 = vweird.f32 %v399
        %vm406 = vmor %vm404, %vm405
        %v407 = vsel %vm406, %v399, %v403
        %v408 = vand.u32 2147483647, %v398
        %vm409 = vcmp.eq.f32.partialorder %v408, 8.507059e+37
        %v410 = vand.u32 %v398, 2147483648
        %v411 = vor.u32 1.1754944e-38, %v410
        %v412 = vsel %vm409, %v411, %v407
        %s413 = vtos %v412
        %s414 = sld [smem:[#allocation5 + %s374]]
        %s415 = sld [smem:[#allocation5 + %s376]]
        %s416 = sld [smem:[#allocation5 + %s378]]
        %s417 = sld [smem:[#allocation5 + %s380]]
        %s418 = sadd.s32 %s374, 4
        %s419 = sld [smem:[#allocation5 + %s418]]
        %s420 = sadd.s32 %s374, 5
        %s421 = sld [smem:[#allocation5 + %s420]]
        %s422 = sadd.s32 %s374, 6
        %s423 = sld [smem:[#allocation5 + %s422]]
        %s424 = sadd.s32 %s374, 7
        %s425 = sld [smem:[#allocation5 + %s424]]
        %s426 = sadd.s32 %s374, 8
        %s427 = sld [smem:[#allocation5 + %s426]]
        %s428 = sadd.s32 %s374, 9
        %s429 = sld [smem:[#allocation5 + %s428]]
        %s430 = sadd.s32 %s374, 10
        %s431 = sld [smem:[#allocation5 + %s430]]
        %s432 = sadd.s32 %s374, 11
        %s433 = sld [smem:[#allocation5 + %s432]]
        %v434 = vld [vmem:[%s294] sm:$0xff]
        %v435 = vld [vmem:[%s294 + $0x8] sm:$0xff]
        %v436 = vlaneseq
        %v437 = vand.u32 %v436, 127
        %v438 = vcvt.s32.f32 %v437
        %v439 = vlaneseq
        %v440 = vshrl.u32 %v439, 7
        %v441 = vadd.s32 %v440, 8
        %v442 = vstv %s373
        %v443 = vadd.s32 %v440, %v442
        %v444 = vadd.s32 %v441, %v442
        %v445 = vcvt.s32.f32 %v443
        %v446 = vcvt.s32.f32 %v444
        %s447 = smul.f32 %s414, %s397
        %s448 = smul.f32 %s415, %s413
        %s449 = smul.f32 %s447, %s379
        %s450 = ssub.f32 %s416, %s449
        %s451 = smul.f32 %s448, %s381
        %s452 = ssub.f32 %s450, %s451
        %v453 = vstv %s447
        %v454 = vmul.f32 %v453, %v438
        %v455 = vstv %s448
        %v456 = vmul.f32 %v455, %v445
        %v457 = vmul.f32 %v455, %v446
        %v458 = vadd.f32 %v454, %v456
        %v459 = vadd.f32 %v454, %v457
        %v460 = vstv %s452
        %v461 = vadd.f32 %v458, %v460
        %v462 = vadd.f32 %v459, %v460
        %v463 = vmul.f32 %v434, %v461
        %v464 = vmul.f32 %v435, %v462
        %v465 = vstv %s417
        %v466 = vadd.f32 %v463, %v465
        %v467 = vadd.f32 %v464, %v465
        %s468 = smul.f32 %s419, %s397
        %s469 = smul.f32 %s421, %s413
        %s470 = smul.f32 %s468, %s379
        %s471 = ssub.f32 %s423, %s470
        %s472 = smul.f32 %s469, %s381
        %s473 = ssub.f32 %s471, %s472
        %v474 = vstv %s468
        %v475 = vmul.f32 %v474, %v438
        %v476 = vstv %s469
        %v477 = vmul.f32 %v476, %v445
        %v478 = vmul.f32 %v476, %v446
        %v479 = vadd.f32 %v475, %v477
        %v480 = vadd.f32 %v475, %v478
        %v481 = vstv %s473
        %v482 = vadd.f32 %v479, %v481
        %v483 = vadd.f32 %v480, %v481
        %v484 = vmul.f32 %v434, %v482
        %v485 = vmul.f32 %v435, %v483
        %v486 = vstv %s425
        %v487 = vadd.f32 %v484, %v486
        %v488 = vadd.f32 %v485, %v486
        %s489 = smul.f32 %s427, %s397
        %s490 = smul.f32 %s429, %s413
        %s491 = smul.f32 %s489, %s379
        %s492 = ssub.f32 %s431, %s491
        %s493 = smul.f32 %s490, %s381
        %s494 = ssub.f32 %s492, %s493
        %v495 = vstv %s489
        %v496 = vmul.f32 %v495, %v438
        %v497 = vstv %s490
        %v498 = vmul.f32 %v497, %v445
        %v499 = vmul.f32 %v497, %v446
        %v500 = vadd.f32 %v496, %v498
        %v501 = vadd.f32 %v496, %v499
        %v502 = vstv %s494
        %v503 = vadd.f32 %v500, %v502
        %v504 = vadd.f32 %v501, %v502
        %v505 = vmul.f32 %v434, %v503
        %v506 = vmul.f32 %v435, %v504
        %v507 = vstv %s433
        %v508 = vadd.f32 %v505, %v507
        %v509 = vadd.f32 %v506, %v507
        %v510 = vld [vmem:[%s304] sm:$0xff]
        %v511 = vld [vmem:[%s304 + $0x8] sm:$0xff]
        %v512 = vadd.f32 %v466, %v510
        %v513 = vadd.f32 %v467, %v511
        %s514 = scalar_lea.vmem %s304, 16 [#allocation8]
        %v515 = vld [vmem:[%s514] sm:$0xff]
        %v516 = vld [vmem:[%s514 + $0x8] sm:$0xff]
        %v517 = vadd.f32 %v487, %v515
        %v518 = vadd.f32 %v488, %v516
        %s519 = scalar_lea.vmem %s304, 32 [#allocation8]
        %v520 = vld [vmem:[%s519] sm:$0xff]
        %v521 = vld [vmem:[%s519 + $0x8] sm:$0xff]
        %v522 = vadd.f32 %v508, %v520
        %v523 = vadd.f32 %v509, %v521
        %v524 = vmax.f32 %v522, 1e-05
        %v525 = vmax.f32 %v523, 1e-05
        %v526 = vrcp.pop %v524
        %v527 = vmul.f32 %v524, %v526
        %v528 = vsub.f32 1.0, %v527
        %v529 = vmul.f32 %v526, %v528
        %v530 = vadd.f32 %v526, %v529
        %vm531 = vweird.f32 %v524
        %vm532 = vweird.f32 %v526
        %vm533 = vmor %vm531, %vm532
        %v534 = vsel %vm533, %v526, %v530
        %v535 = vand.u32 2147483647, %v524
        %vm536 = vcmp.eq.f32.partialorder %v535, 8.507059e+37
        %v537 = vand.u32 %v524, 2147483648
        %v538 = vor.u32 1.1754944e-38, %v537
        %v539 = vsel %vm536, %v538, %v534
        %v540 = vrcp.pop %v525
        %v541 = vmul.f32 %v525, %v540
        %v542 = vsub.f32 1.0, %v541
        %v543 = vmul.f32 %v540, %v542
        %v544 = vadd.f32 %v540, %v543
        %vm545 = vweird.f32 %v525
        %vm546 = vweird.f32 %v540
        %vm547 = vmor %vm545, %vm546
        %v548 = vsel %vm547, %v540, %v544
        %v549 = vand.u32 2147483647, %v525
        %vm550 = vcmp.eq.f32.partialorder %v549, 8.507059e+37
        %v551 = vand.u32 %v525, 2147483648
        %v552 = vor.u32 1.1754944e-38, %v551
        %v553 = vsel %vm550, %v552, %v548
        %s554 = smul.f32 %s375, 0.13333334
        %s555 = smul.f32 %s377, 0.13333334
        %s556 = smul.f32 %s379, 0.13333334
        %s557 = ssub.f32 %s556, 1.0
        %s558 = smul.f32 %s381, 0.13333334
        %s559 = ssub.f32 %s558, 1.0
        %v560 = vmul.f32 %v512, %v539
        %v561 = vmul.f32 %v513, %v553
        %v562 = vstv %s554
        %v563 = vmul.f32 %v562, %v560
        %v564 = vmul.f32 %v562, %v561
        %v565 = vstv %s557
        %v566 = vadd.f32 %v563, %v565
        %v567 = vadd.f32 %v564, %v565
        %vm568 = vcmask 130048
        %569 = vst.msk [vmem:[%s361] sm:$0xff] %vm568, %v566
        %570 = vst.msk [vmem:[%s361 + $0x8] sm:$0xff] %vm568, %v567
        %v571 = vmul.f32 %v517, %v539
        %v572 = vmul.f32 %v518, %v553
        %v573 = vstv %s555
        %v574 = vmul.f32 %v573, %v571
        %v575 = vmul.f32 %v573, %v572
        %v576 = vstv %s559
        %v577 = vadd.f32 %v574, %v576
        %v578 = vadd.f32 %v575, %v576
        %579 = vst.msk [vmem:[%s371] sm:$0xff] %vm568, %v577
        %580 = vst.msk [vmem:[%s371 + $0x8] sm:$0xff] %vm568, %v578
        %s581 = smul.u32 2, %s30
        %p582 = scmp.lt.s32.totalorder %s29, 1
        %s583 = scalar_select %p582, %s29, 1
        %p584 = scmp.lt.s32.totalorder %s581, 1
        %s585 = scalar_select %p584, %s581, 1
        %s586 = smul.addr %s583, 2
        %s587 = sadd.s32 %s585, %s586
        %s588 = smul.addr %s587, 8
        %s589 = scalar_lea.vmem %s4, %s588
        %s590 = smul.u32 2, %s30
        %p591 = scmp.lt.s32.totalorder %s29, 1
        %s592 = scalar_select %p591, %s29, 1
        %p593 = scmp.lt.s32.totalorder %s590, 1
        %s594 = scalar_select %p593, %s590, 1
        %s595 = smul.addr %s592, 2
        %s596 = sadd.s32 %s594, %s595
        %s597 = smul.addr %s596, 8
        %s598 = scalar_lea.vmem %s5, %s597
        // Predicated region
        $region53: #{_warp_impl.1} parent=35 // pred_check
          %p599 = pneg %p155
        $region54: #{_warp_impl.1} parent=35 // pred_check_branch
          %601 = sbr.rel (%p599) target = $region56
        $region55: #{_warp_impl.1} parent=35 // pred_region
          %s602 = smul.u32 2, %s30
        $region56: #{_warp_impl.1} parent=35 // pred_fallthru
          _
        // Predicated region
        $region57: #{_warp_impl.1} parent=35 // pred_check
          %p603 = pneg %p183
        $region58: #{_warp_impl.1} parent=35 // pred_check_branch
          %605 = sbr.rel (%p603) target = $region60
        $region59: #{_warp_impl.1} parent=35 // pred_region
          %s606 = smul.u32 2, %s30
        $region60: #{_warp_impl.1} parent=35 // pred_fallthru
          _
      $region36: #{_warp_impl.1} parent=5 // pred_fallthru
        _
      %p607 = scmp.le.s32.totalorder 2, %s20
      // Predicated region
      $region61: #{_warp_impl.1} parent=5 // pred_check
        %p608 = pneg %p607
      $region62: #{_warp_impl.1} parent=5 // pred_check_branch
        %610 = sbr.rel (%p608) target = $region64
      $region63: #{_warp_impl.1} parent=5 // pred_region
        %s611 = ssub.s32 %s20, 2
        // Predicated region
        $region65: #{_warp_impl.1} parent=63 // pred_check
          %p612 = pneg %p161
        $region66: #{_warp_impl.1} parent=63 // pred_check_branch
          %614 = sbr.rel (%p612) target = $region68
        $region67: #{_warp_impl.1} parent=63 // pred_region
          %s615 = smul.u32 2, %s32
          %p616 = scmp.lt.s32.totalorder %s31, 1
          %s617 = scalar_select %p616, %s31, 1
          %p618 = scmp.lt.s32.totalorder %s615, 1
          %s619 = scalar_select %p618, %s615, 1
          %s620 = smul.addr %s617, 2
          %s621 = sadd.s32 %s619, %s620
          %s622 = smul.addr %s621, 8
          %s623 = scalar_lea.vmem %s4, %s622
        $region68: #{_warp_impl.1} parent=63 // pred_fallthru
          _
        // Predicated region
        $region69: #{_warp_impl.1} parent=63 // pred_check
          %p624 = pneg %p189
        $region70: #{_warp_impl.1} parent=63 // pred_check_branch
          %626 = sbr.rel (%p624) target = $region72
        $region71: #{_warp_impl.1} parent=63 // pred_region
          %s627 = smul.u32 2, %s32
          %p628 = scmp.lt.s32.totalorder %s31, 1
          %s629 = scalar_select %p628, %s31, 1
          %p630 = scmp.lt.s32.totalorder %s627, 1
          %s631 = scalar_select %p630, %s627, 1
          %s632 = smul.addr %s629, 2
          %s633 = sadd.s32 %s631, %s632
          %s634 = smul.addr %s633, 8
          %s635 = scalar_lea.vmem %s5, %s634
        $region72: #{_warp_impl.1} parent=63 // pred_fallthru
          _
      $region64: #{_warp_impl.1} parent=5 // pred_fallthru
        _
    $region6: #{_warp_impl.1} parent=1 // loop_footer
      %s24 = sadd.s32 1, %s20
    $region7: #{_warp_impl.1} parent=1 // loop_footer_branch
      %19 = sbr.rel target = $region3
    $region8: #{_warp_impl.1} parent=1 // loop_exit
      _
    %636 = vsyncpa [#allocation3], 1
    %s637 = scalar_lea.sflag [#allocation3], 1
    %638 = vsyncpa %s637, 1
    %639 = vsyncpa [#allocation9], 1
    %s640 = scalar_lea.sflag [#allocation9], 1
    %641 = vsyncpa %s640, 1
    %642 = vsyncpa [#allocation4], 1
    %s643 = scalar_lea.sflag [#allocation4], 1
    %644 = vsyncpa %s643, 1
    %645 = vsyncpa [#allocation6], 1

</llo_original>
